<compile_context>
chip_gen: v7x
topology: tpu7x:2x2x1
jax: 0.10.0
libtpu: 0.0.40
codegen_flags: <defaults>
</compile_context>

<pallas_src>
import functools
import math

import jax
import jax.numpy as jnp
import numpy as np
from jax.experimental import pallas as pl
from jax.experimental.pallas import tpu as pltpu


# ----------------------------- Pallas kernel --------------------------------
def _mlp_kernel(n_layers, *refs):
    (x_ref, t_ref, freq_ref,
     te_w1s_ref, te_w1c_ref, te_b1_ref, te_w2_ref, te_b2_ref) = refs[:8]
    layer_refs = refs[8:8 + 2 * n_layers]
    last_w_ref, last_b_ref, out_ref = refs[8 + 2 * n_layers:]

    f32 = jnp.float32
    bf16 = jnp.bfloat16

    # ---- TimeEmbedding: sinusoidal feats -> Linear -> Swish -> Linear ----
    # te_w1 split into sin/cos halves at init: two accumulating dots, no lane-axis concat.
    arg = t_ref[...] * freq_ref[...]                                     # (B, half_dim) f32
    h = (jnp.dot(jnp.sin(arg).astype(bf16), te_w1s_ref[...], preferred_element_type=f32)
         + jnp.dot(jnp.cos(arg).astype(bf16), te_w1c_ref[...], preferred_element_type=f32)
         + te_b1_ref[...])
    h = h * jax.nn.sigmoid(h)                                            # Swish (f32, EUP)
    t_emb = (jnp.dot(h.astype(bf16), te_w2_ref[...], preferred_element_type=f32)
             + te_b2_ref[...])                                           # (B, time_emb) f32
    t_emb_bf = t_emb.astype(bf16)                                        # loop-invariant

    # ---- hidden layers: x = relu([t_emb, x] @ [tw_i; fw_i] + (tb_i + fb_i)) ----
    x = x_ref[...]
    for i in range(n_layers):
        w_ref, b_ref = layer_refs[2 * i], layer_refs[2 * i + 1]
        xa = jnp.concatenate([t_emb_bf, x.astype(bf16)], axis=-1)        # t_emb lane-aligned
        x = jnp.dot(xa, w_ref[...], preferred_element_type=f32) + b_ref[...]
        x = jnp.maximum(x, 0.0)                                          # hidden_activation=relu

    # ---- last fc, identity output activation ----
    out_ref[...] = (jnp.dot(x.astype(bf16), last_w_ref[...], preferred_element_type=f32)
                    + last_b_ref[...])


# ------------------------------- wrapper -------------------------------------
def mlp_forward(x, t, flat_params, *, n_layers, output_size):
    """x: (B, input_size) f32; t: (B,) f32 timesteps."""
    B = x.shape[0]
    args = (x.astype(jnp.float32), t.reshape(B, 1).astype(jnp.float32), *flat_params)

    # Cost estimate (advisory): all matmul weights are the 2-D bf16 params.
    freq, te_w1s, te_w1c, _, te_w2, _ = flat_params[:6]
    layer_ws = [flat_params[6 + 2 * i] for i in range(n_layers)]
    last_w = flat_params[-2]
    mm_ws = [te_w1s, te_w1c, te_w2] + layer_ws + [last_w]
    flops = sum(2 * B * w.shape[0] * w.shape[1] for w in mm_ws)
    transcendentals = B * (2 * freq.shape[1] + te_w2.shape[1])           # sin+cos+sigmoid
    bytes_accessed = sum(int(np.prod(a.shape)) * a.dtype.itemsize for a in args)
    bytes_accessed += B * output_size * 4

    kernel = functools.partial(_mlp_kernel, n_layers)
    return pl.pallas_call(
        kernel,
        out_shape=jax.ShapeDtypeStruct((B, output_size), jnp.float32),
        in_specs=[pl.BlockSpec(memory_space=pltpu.MemorySpace.VMEM)] * len(args),
        out_specs=pl.BlockSpec(memory_space=pltpu.MemorySpace.VMEM),
        cost_estimate=pl.CostEstimate(flops=flops,
                                      transcendentals=transcendentals,
                                      bytes_accessed=bytes_accessed),
    )(*args)


# -------------------------- deterministic params ----------------------------
def init_params(key, input_size, output_size, hidden_sizes,
                init_w=1e-4, b_init_value=0.0, weight_dtype=jnp.bfloat16):
    n_channels = hidden_sizes[0]
    time_emb_size = n_channels * 4
    half_dim = time_emb_size // 8
    denom = max(half_dim - 1, 1)                                          # guard half_dim==1
    freq = jnp.exp(jnp.arange(half_dim, dtype=jnp.float32)
                   * -(math.log(10000.0) / denom))[None, :]               # (1, half_dim) f32

    keys = iter(jax.random.split(key, 64))

    def fanin_f32(shape):   # fanin_init: U(-1/sqrt(fan_in), 1/sqrt(fan_in)); stored (in, out)
        bound = 1.0 / math.sqrt(shape[0])
        return jax.random.uniform(next(keys), shape, jnp.float32, -bound, bound)

    def bias(n, val=0.0):
        return jnp.full((1, n), val, jnp.float32)

    flat = [freq]
    # TimeEmbedding: Linear(time_emb//4, time_emb) -> Swish -> Linear(time_emb, time_emb)
    te_w1 = fanin_f32((time_emb_size // 4, time_emb_size))
    flat += [te_w1[:half_dim].astype(weight_dtype),          # sin half
             te_w1[half_dim:].astype(weight_dtype),          # cos half
             bias(time_emb_size),
             fanin_f32((time_emb_size, time_emb_size)).astype(weight_dtype),
             bias(time_emb_size)]
    # Hidden layers: stacked [tw_i; fw_i] along K, pre-summed bias (tb_i + fb_i)
    in_size = input_size
    for next_size in hidden_sizes:
        tw = fanin_f32((time_emb_size, next_size))            # fan_in = time_emb_size
        fw = fanin_f32((in_size, next_size))                  # fan_in = in_size
        flat += [jnp.concatenate([tw, fw], axis=0).astype(weight_dtype),
                 bias(next_size, 2.0 * b_init_value)]         # fb + tb pre-summed
        in_size = next_size
    # last_fc: U(-init_w, init_w) weights, zero bias
    flat += [jax.random.uniform(next(keys), (in_size, output_size),
                                jnp.float32, -init_w, init_w).astype(weight_dtype),
             bias(output_size, 0.0)]
    return flat


# ------------------------------ pure-JAX ref ---------------------------------
def reference_forward(x, t, flat, n_layers):
    """Mirrors the kernel math (same bf16 weights / casts, f32 accumulate)."""
    f32, bf16 = jnp.float32, jnp.bfloat16
    freq, w1s, w1c, b1, w2, b2 = flat[:6]
    layer_p = flat[6:6 + 2 * n_layers]
    last_w, last_b = flat[6 + 2 * n_layers:]

    arg = t[:, None] * freq
    h = (jnp.dot(jnp.sin(arg).astype(bf16), w1s, preferred_element_type=f32)
         + jnp.dot(jnp.cos(arg).astype(bf16), w1c, preferred_element_type=f32) + b1)
    h = h * jax.nn.sigmoid(h)
    t_emb = jnp.dot(h.astype(bf16), w2, preferred_element_type=f32) + b2
    y = x
    for i in range(n_layers):
        w, b = layer_p[2 * i], layer_p[2 * i + 1]
        ya = jnp.concatenate([t_emb.astype(bf16), y.astype(bf16)], axis=-1)
        y = jnp.maximum(jnp.dot(ya, w, preferred_element_type=f32) + b, 0.0)
    return jnp.dot(y.astype(bf16), last_w, preferred_element_type=f32) + last_b


# ----------------------------------- main ------------------------------------
if __name__ == "__main__":
    B = 8
    input_size, output_size = 4, 4
    hidden_sizes = [32, 32]

    key = jax.random.PRNGKey(0)
    kx, kt, kp = jax.random.split(key, 3)
    x = jax.random.normal(kx, (B, input_size), jnp.float32)
    t = jax.random.uniform(kt, (B,), jnp.float32, 0.0, 1000.0)

    flat = init_params(kp, input_size, output_size, hidden_sizes)

    out = mlp_forward(x, t, flat, n_layers=len(hidden_sizes), output_size=output_size)
    out = jax.block_until_ready(out)

    ref = reference_forward(x, t, flat, len(hidden_sizes))
    np.testing.assert_allclose(np.asarray(out), np.asarray(ref), rtol=1e-4, atol=1e-5)

    print("KERNEL_OK")
</pallas_src>

<mosaic_0001>
module attributes {stable_mosaic.version = 11 : i64} {
  func.func @_mlp_kernel(%arg0: memref<8x4xf32, #tpu.memory_space<vmem>>, %arg1: memref<8x1xf32, #tpu.memory_space<vmem>>, %arg2: memref<1x16xf32, #tpu.memory_space<vmem>>, %arg3: memref<16x128xbf16, #tpu.memory_space<vmem>>, %arg4: memref<16x128xbf16, #tpu.memory_space<vmem>>, %arg5: memref<1x128xf32, #tpu.memory_space<vmem>>, %arg6: memref<128x128xbf16, #tpu.memory_space<vmem>>, %arg7: memref<1x128xf32, #tpu.memory_space<vmem>>, %arg8: memref<132x32xbf16, #tpu.memory_space<vmem>>, %arg9: memref<1x32xf32, #tpu.memory_space<vmem>>, %arg10: memref<160x32xbf16, #tpu.memory_space<vmem>>, %arg11: memref<1x32xf32, #tpu.memory_space<vmem>>, %arg12: memref<32x4xbf16, #tpu.memory_space<vmem>>, %arg13: memref<1x4xf32, #tpu.memory_space<vmem>>, %arg14: memref<8x4xf32, #tpu.memory_space<vmem>>) attributes {dimension_semantics = [], scalar_prefetch = 0 : i64, scratch_operands = 0 : i64, tpu.core_type = #tpu.core_type<tc>} {
    %c0 = arith.constant 0 : index
    %c0_0 = arith.constant 0 : index
    %0 = vector.load %arg1[%c0, %c0_0] : memref<8x1xf32, #tpu.memory_space<vmem>>, vector<8x1xf32>
    %c0_1 = arith.constant 0 : index
    %c0_2 = arith.constant 0 : index
    %1 = vector.load %arg2[%c0_1, %c0_2] : memref<1x16xf32, #tpu.memory_space<vmem>>, vector<1x16xf32>
    %2 = vector.broadcast %0 : vector<8x1xf32> to vector<8x16xf32>
    %3 = vector.broadcast %1 : vector<1x16xf32> to vector<8x16xf32>
    %4 = arith.mulf %2, %3 : vector<8x16xf32>
    %5 = math.sin %4 : vector<8x16xf32>
    %6 = arith.truncf %5 : vector<8x16xf32> to vector<8x16xbf16>
    %c0_3 = arith.constant 0 : index
    %c0_4 = arith.constant 0 : index
    %7 = vector.load %arg3[%c0_3, %c0_4] : memref<16x128xbf16, #tpu.memory_space<vmem>>, vector<16x128xbf16>
    %cst = arith.constant dense<0.000000e+00> : vector<8x128xf32>
    %8 = tpu.matmul %6, %7, %cst {dimension_numbers = #tpu.dot_dimension_numbers<[1], [0], [0], [1], [0, 0, 1, 1], [], []>} : vector<8x16xbf16>, vector<16x128xbf16>, vector<8x128xf32> -> vector<8x128xf32>
    %9 = math.cos %4 : vector<8x16xf32>
    %10 = arith.truncf %9 : vector<8x16xf32> to vector<8x16xbf16>
    %c0_5 = arith.constant 0 : index
    %c0_6 = arith.constant 0 : index
    %11 = vector.load %arg4[%c0_5, %c0_6] : memref<16x128xbf16, #tpu.memory_space<vmem>>, vector<16x128xbf16>
    %cst_7 = arith.constant dense<0.000000e+00> : vector<8x128xf32>
    %12 = tpu.matmul %10, %11, %cst_7 {dimension_numbers = #tpu.dot_dimension_numbers<[1], [0], [0], [1], [0, 0, 1, 1], [], []>} : vector<8x16xbf16>, vector<16x128xbf16>, vector<8x128xf32> -> vector<8x128xf32>
    %13 = arith.addf %8, %12 : vector<8x128xf32>
    %c0_8 = arith.constant 0 : index
    %c0_9 = arith.constant 0 : index
    %14 = vector.load %arg5[%c0_8, %c0_9] : memref<1x128xf32, #tpu.memory_space<vmem>>, vector<1x128xf32>
    %15 = vector.broadcast %14 : vector<1x128xf32> to vector<8x128xf32>
    %16 = arith.addf %13, %15 : vector<8x128xf32>
    %17 = arith.negf %16 : vector<8x128xf32>
    %18 = math.exp %17 : vector<8x128xf32>
    %cst_10 = arith.constant 1.000000e+00 : f32
    %19 = vector.broadcast %cst_10 : f32 to vector<8x128xf32>
    %20 = arith.addf %19, %18 : vector<8x128xf32>
    %21 = arith.divf %19, %20 : vector<8x128xf32>
    %22 = arith.mulf %16, %21 : vector<8x128xf32>
    %23 = arith.truncf %22 : vector<8x128xf32> to vector<8x128xbf16>
    %c0_11 = arith.constant 0 : index
    %c0_12 = arith.constant 0 : index
    %24 = vector.load %arg6[%c0_11, %c0_12] : memref<128x128xbf16, #tpu.memory_space<vmem>>, vector<128x128xbf16>
    %cst_13 = arith.constant dense<0.000000e+00> : vector<8x128xf32>
    %25 = tpu.matmul %23, %24, %cst_13 {dimension_numbers = #tpu.dot_dimension_numbers<[1], [0], [0], [1], [0, 0, 1, 1], [], []>} : vector<8x128xbf16>, vector<128x128xbf16>, vector<8x128xf32> -> vector<8x128xf32>
    %c0_14 = arith.constant 0 : index
    %c0_15 = arith.constant 0 : index
    %26 = vector.load %arg7[%c0_14, %c0_15] : memref<1x128xf32, #tpu.memory_space<vmem>>, vector<1x128xf32>
    %27 = vector.broadcast %26 : vector<1x128xf32> to vector<8x128xf32>
    %28 = arith.addf %25, %27 : vector<8x128xf32>
    %29 = arith.truncf %28 : vector<8x128xf32> to vector<8x128xbf16>
    %c0_16 = arith.constant 0 : index
    %c0_17 = arith.constant 0 : index
    %30 = vector.load %arg0[%c0_16, %c0_17] : memref<8x4xf32, #tpu.memory_space<vmem>>, vector<8x4xf32>
    %31 = arith.truncf %30 : vector<8x4xf32> to vector<8x4xbf16>
    %32 = tpu.concatenate %29, %31 in 1 : vector<8x128xbf16>, vector<8x4xbf16> -> vector<8x132xbf16>
    %c0_18 = arith.constant 0 : index
    %c0_19 = arith.constant 0 : index
    %33 = vector.load %arg8[%c0_18, %c0_19] : memref<132x32xbf16, #tpu.memory_space<vmem>>, vector<132x32xbf16>
    %cst_20 = arith.constant dense<0.000000e+00> : vector<8x32xf32>
    %34 = tpu.matmul %32, %33, %cst_20 {dimension_numbers = #tpu.dot_dimension_numbers<[1], [0], [0], [1], [0, 0, 1, 1], [], []>} : vector<8x132xbf16>, vector<132x32xbf16>, vector<8x32xf32> -> vector<8x32xf32>
    %c0_21 = arith.constant 0 : index
    %c0_22 = arith.constant 0 : index
    %35 = vector.load %arg9[%c0_21, %c0_22] : memref<1x32xf32, #tpu.memory_space<vmem>>, vector<1x32xf32>
    %36 = vector.broadcast %35 : vector<1x32xf32> to vector<8x32xf32>
    %37 = arith.addf %34, %36 : vector<8x32xf32>
    %cst_23 = arith.constant 0.000000e+00 : f32
    %38 = vector.broadcast %cst_23 : f32 to vector<8x32xf32>
    %39 = arith.maximumf %37, %38 : vector<8x32xf32>
    %40 = arith.truncf %39 : vector<8x32xf32> to vector<8x32xbf16>
    %41 = tpu.concatenate %29, %40 in 1 : vector<8x128xbf16>, vector<8x32xbf16> -> vector<8x160xbf16>
    %c0_24 = arith.constant 0 : index
    %c0_25 = arith.constant 0 : index
    %42 = vector.load %arg10[%c0_24, %c0_25] : memref<160x32xbf16, #tpu.memory_space<vmem>>, vector<160x32xbf16>
    %cst_26 = arith.constant dense<0.000000e+00> : vector<8x32xf32>
    %43 = tpu.matmul %41, %42, %cst_26 {dimension_numbers = #tpu.dot_dimension_numbers<[1], [0], [0], [1], [0, 0, 1, 1], [], []>} : vector<8x160xbf16>, vector<160x32xbf16>, vector<8x32xf32> -> vector<8x32xf32>
    %c0_27 = arith.constant 0 : index
    %c0_28 = arith.constant 0 : index
    %44 = vector.load %arg11[%c0_27, %c0_28] : memref<1x32xf32, #tpu.memory_space<vmem>>, vector<1x32xf32>
    %45 = vector.broadcast %44 : vector<1x32xf32> to vector<8x32xf32>
    %46 = arith.addf %43, %45 : vector<8x32xf32>
    %cst_29 = arith.constant 0.000000e+00 : f32
    %47 = vector.broadcast %cst_29 : f32 to vector<8x32xf32>
    %48 = arith.maximumf %46, %47 : vector<8x32xf32>
    %49 = arith.truncf %48 : vector<8x32xf32> to vector<8x32xbf16>
    %c0_30 = arith.constant 0 : index
    %c0_31 = arith.constant 0 : index
    %50 = vector.load %arg12[%c0_30, %c0_31] : memref<32x4xbf16, #tpu.memory_space<vmem>>, vector<32x4xbf16>
    %cst_32 = arith.constant dense<0.000000e+00> : vector<8x4xf32>
    %51 = tpu.matmul %49, %50, %cst_32 {dimension_numbers = #tpu.dot_dimension_numbers<[1], [0], [0], [1], [0, 0, 1, 1], [], []>} : vector<8x32xbf16>, vector<32x4xbf16>, vector<8x4xf32> -> vector<8x4xf32>
    %c0_33 = arith.constant 0 : index
    %c0_34 = arith.constant 0 : index
    %52 = vector.load %arg13[%c0_33, %c0_34] : memref<1x4xf32, #tpu.memory_space<vmem>>, vector<1x4xf32>
    %53 = vector.broadcast %52 : vector<1x4xf32> to vector<8x4xf32>
    %54 = arith.addf %51, %53 : vector<8x4xf32>
    %c0_35 = arith.constant 0 : index
    %c0_36 = arith.constant 0 : index
    %55 = vector.load %arg14[%c0_35, %c0_36] : memref<8x4xf32, #tpu.memory_space<vmem>>, vector<8x4xf32>
    tpu.vector_store %arg14[%c0_35, %c0_36], %54 {strides = array<i32>} : memref<8x4xf32, #tpu.memory_space<vmem>>, vector<8x4xf32>,
    return
  }
}

</mosaic_0001>

<llo_original>
// kernel: tpu_custom_call.1
$region0: #{tpu_custom_call.1}
  #allocation0 [shape = 'u32[]', space=smem, size = 0x4, offset = 0x4, fixed_abs, tag = 'smem constant byte address 0x4 - core index']
  #allocation1 [shape = 'u32[144,128]{1,0:T(1,128)}', space=vmem, size = 0x12000, scoped, tag = 'internal scratch']
  %s0 = inlined_call_operand.vmem [shape: f32[8,4], index: 0, kind: input, shape index: {}]
  %s1 = inlined_call_operand.vmem [shape: f32[8,1], index: 1, kind: input, shape index: {}]
  %s2 = inlined_call_operand.vmem [shape: f32[1,16], index: 2, kind: input, shape index: {}]
  %s3 = inlined_call_operand.vmem [shape: bf16[16,128], index: 3, kind: input, shape index: {}]
  %s4 = inlined_call_operand.vmem [shape: bf16[16,128], index: 4, kind: input, shape index: {}]
  %s5 = inlined_call_operand.vmem [shape: f32[1,128], index: 5, kind: input, shape index: {}]
  %s6 = inlined_call_operand.vmem [shape: bf16[128,128], index: 6, kind: input, shape index: {}]
  %s7 = inlined_call_operand.vmem [shape: f32[1,128], index: 7, kind: input, shape index: {}]
  %s8 = inlined_call_operand.vmem [shape: bf16[132,32], index: 8, kind: input, shape index: {}]
  %s9 = inlined_call_operand.vmem [shape: f32[1,32], index: 9, kind: input, shape index: {}]
  %s10 = inlined_call_operand.vmem [shape: bf16[160,32], index: 10, kind: input, shape index: {}]
  %s11 = inlined_call_operand.vmem [shape: f32[1,32], index: 11, kind: input, shape index: {}]
  %s12 = inlined_call_operand.vmem [shape: bf16[32,4], index: 12, kind: input, shape index: {}]
  %s13 = inlined_call_operand.vmem [shape: f32[1,4], index: 13, kind: input, shape index: {}]
  %s14 = inlined_call_operand.vmem [shape: f32[8,4], index: 14, kind: output, shape index: {}]
  %s15 = sld [smem:[#allocation0]]
  $region66: #{tpu_custom_call.1} parent=0
    _
  %s17 = ssub.s32 1, %s15
  %s18 = scalar_select 0, %s17, %s15
  // Predicated region
  $region2: #{tpu_custom_call.1} parent=0 // pred_check
    _
  $region3: #{tpu_custom_call.1} parent=0 // pred_check_branch
    %20 = sbr.rel (0) target = $region5
  $region4: #{tpu_custom_call.1} parent=0 // pred_region
    _
  $region5: #{tpu_custom_call.1} parent=0 // pred_fallthru
    _
  // Predicated region
  $region6: #{tpu_custom_call.1} parent=0 // pred_check
    _
  $region7: #{tpu_custom_call.1} parent=0 // pred_check_branch
    %22 = sbr.rel (0) target = $region9
  $region8: #{tpu_custom_call.1} parent=0 // pred_region
    _
  $region9: #{tpu_custom_call.1} parent=0 // pred_fallthru
    _
  // Predicated region
  $region10: #{tpu_custom_call.1} parent=0 // pred_check
    _
  $region11: #{tpu_custom_call.1} parent=0 // pred_check_branch
    %24 = sbr.rel (0) target = $region13
  $region12: #{tpu_custom_call.1} parent=0 // pred_region
    _
  $region13: #{tpu_custom_call.1} parent=0 // pred_fallthru
    _
  // Predicated region
  $region14: #{tpu_custom_call.1} parent=0 // pred_check
    _
  $region15: #{tpu_custom_call.1} parent=0 // pred_check_branch
    %26 = sbr.rel (0) target = $region17
  $region16: #{tpu_custom_call.1} parent=0 // pred_region
    _
  $region17: #{tpu_custom_call.1} parent=0 // pred_fallthru
    _
  // Predicated region
  $region18: #{tpu_custom_call.1} parent=0 // pred_check
    _
  $region19: #{tpu_custom_call.1} parent=0 // pred_check_branch
    %28 = sbr.rel (0) target = $region21
  $region20: #{tpu_custom_call.1} parent=0 // pred_region
    _
  $region21: #{tpu_custom_call.1} parent=0 // pred_fallthru
    _
  // Predicated region
  $region22: #{tpu_custom_call.1} parent=0 // pred_check
    _
  $region23: #{tpu_custom_call.1} parent=0 // pred_check_branch
    %30 = sbr.rel (0) target = $region25
  $region24: #{tpu_custom_call.1} parent=0 // pred_region
    _
  $region25: #{tpu_custom_call.1} parent=0 // pred_fallthru
    _
  // Predicated region
  $region26: #{tpu_custom_call.1} parent=0 // pred_check
    _
  $region27: #{tpu_custom_call.1} parent=0 // pred_check_branch
    %32 = sbr.rel (0) target = $region29
  $region28: #{tpu_custom_call.1} parent=0 // pred_region
    _
  $region29: #{tpu_custom_call.1} parent=0 // pred_fallthru
    _
  // Predicated region
  $region30: #{tpu_custom_call.1} parent=0 // pred_check
    _
  $region31: #{tpu_custom_call.1} parent=0 // pred_check_branch
    %34 = sbr.rel (0) target = $region33
  $region32: #{tpu_custom_call.1} parent=0 // pred_region
    _
  $region33: #{tpu_custom_call.1} parent=0 // pred_fallthru
    _
  // Predicated region
  $region34: #{tpu_custom_call.1} parent=0 // pred_check
    _
  $region35: #{tpu_custom_call.1} parent=0 // pred_check_branch
    %36 = sbr.rel (0) target = $region37
  $region36: #{tpu_custom_call.1} parent=0 // pred_region
    _
  $region37: #{tpu_custom_call.1} parent=0 // pred_fallthru
    _
  // Predicated region
  $region38: #{tpu_custom_call.1} parent=0 // pred_check
    _
  $region39: #{tpu_custom_call.1} parent=0 // pred_check_branch
    %38 = sbr.rel (0) target = $region41
  $region40: #{tpu_custom_call.1} parent=0 // pred_region
    _
  $region41: #{tpu_custom_call.1} parent=0 // pred_fallthru
    _
  // Predicated region
  $region42: #{tpu_custom_call.1} parent=0 // pred_check
    _
  $region43: #{tpu_custom_call.1} parent=0 // pred_check_branch
    %40 = sbr.rel (0) target = $region45
  $region44: #{tpu_custom_call.1} parent=0 // pred_region
    _
  $region45: #{tpu_custom_call.1} parent=0 // pred_fallthru
    _
  // Predicated region
  $region46: #{tpu_custom_call.1} parent=0 // pred_check
    _
  $region47: #{tpu_custom_call.1} parent=0 // pred_check_branch
    %42 = sbr.rel (0) target = $region49
  $region48: #{tpu_custom_call.1} parent=0 // pred_region
    _
  $region49: #{tpu_custom_call.1} parent=0 // pred_fallthru
    _
  // Predicated region
  $region50: #{tpu_custom_call.1} parent=0 // pred_check
    _
  $region51: #{tpu_custom_call.1} parent=0 // pred_check_branch
    %44 = sbr.rel (0) target = $region53
  $region52: #{tpu_custom_call.1} parent=0 // pred_region
    _
  $region53: #{tpu_custom_call.1} parent=0 // pred_fallthru
    _
  // Predicated region
  $region54: #{tpu_custom_call.1} parent=0 // pred_check
    _
  $region55: #{tpu_custom_call.1} parent=0 // pred_check_branch
    %46 = sbr.rel (0) target = $region57
  $region56: #{tpu_custom_call.1} parent=0 // pred_region
    _
  $region57: #{tpu_custom_call.1} parent=0 // pred_fallthru
    _
  %v48 = vld [vmem:[%s1] sm:$0xff]
  %v49 = vld [vmem:[%s2] sm:$0x1]
  %51 = vset.pattern.permute.xlu0 0
  %52 = vperm.xlu0 %51, %v48
  %v53 = vpop.permute.xlu0 %52
  %v56 = vlaneseq
  %v57 = vshrl.u32 %v56, 7
  %v58 = vsub.s32 0, %v57
  %v59 = vrot.slane %v49, %v58
  %v61 = vmul.f32 %v53, %v59
  %v62 = vand.u32 2147483647, %v61
  %vm63 = vcmp.le.f32.partialorder %v62, 0.7853982
  %vm64 = vcmp.lt.s32.totalorder %v61, 0
  %v65 = vand.u32 %v61, 2139095040
  %v66 = vshrl.u32 %v65, 23
  %v67 = vsub.s32 %v66, 127
  %v68 = vand.u32 2147483647, %v61
  %v69 = vand.u32 %v68, 8388607
  %v70 = vor.u32 %v69, 8388608
  %v71 = vsub.s32 0, %v70
  %v72 = vadd.s32 %v67, 1
  %vm73 = vcmp.gt.s32.totalorder %v72, 0
  %v74 = vsel %vm73, %v72, 0
  %v75 = vshrl.u32 %v74, 5
  %v76 = vand.u32 %v74, 31
  %v77 = vsub.s32 32, %v76
  %v78 = vshrl.u32 683565275, %v77
  %v79 = vshll.u32 683565275, %v76
  %v80 = vshrl.u32 2475754826, %v77
  %v81 = vor.u32 %v79, %v80
  %v82 = vshll.u32 2475754826, %v76
  %v83 = vshrl.u32 2131351028, %v77
  %v84 = vor.u32 %v82, %v83
  %v85 = vshll.u32 2131351028, %v76
  %v86 = vshrl.u32 2102212464, %v77
  %v87 = vor.u32 %v85, %v86
  %v88 = vshll.u32 2102212464, %v76
  %v89 = vshrl.u32 920167782, %v77
  %v90 = vor.u32 %v88, %v89
  %v91 = vshll.u32 920167782, %v76
  %v92 = vshrl.u32 1326507024, %v77
  %v93 = vor.u32 %v91, %v92
  %vm94 = vcmp.lt.s32.totalorder %v75, 1
  %vm95 = vcmp.lt.s32.totalorder %v75, 2
  %vm96 = vcmp.lt.s32.totalorder %v75, 3
  %vm97 = vcmp.lt.s32.totalorder %v75, 4
  %v98 = vsel %vm94, %v78, %v81
  %v99 = vsel %vm97, %v87, 2102212464
  %v100 = vsel %vm96, %v84, %v99
  %v101 = vsel %vm95, %v98, %v100
  %v102 = vsel %vm94, %v81, %v84
  %v103 = vsel %vm97, %v90, 920167782
  %v104 = vsel %vm96, %v87, %v103
  %v105 = vsel %vm95, %v102, %v104
  %v106 = vsel %vm94, %v84, %v87
  %v107 = vsel %vm97, %v93, 1326507024
  %v108 = vsel %vm96, %v90, %v107
  %v109 = vsel %vm95, %v106, %v108
  %v110 = vshll.u32 %v70, 8
  %v111 = vmul.u32.u64.compose %v110, %v109
  %v112 = vextract.low.u32 %v111
  %v113 = vextract.high.u32 %v111
  %v114 = vmul.u32.u64.compose %v110, %v105
  %v115 = vextract.low.u32 %v114
  %v116 = vextract.high.u32 %v114
  %v117 = vmul.u32 %v110, %v101
  %v118 = vadd.s32 %v113, %v115
  %vm119 = vc.u32 %v113, %v115
  %v120 = vadd.s32 %v116, 1
  %v121 = vsel %vm119, %v120, %v116
  %v122 = vadd.s32 %v117, %v121
  %v123 = vadd.s32 %v122, 536870912
  %v124 = vshrl.u32 %v123, 30
  %v125 = vshll.u32 %v124, 30
  %v126 = vsub.s32 %v122, %v125
  %vm127 = vcmp.lt.s32.totalorder %v126, 0
  %v128 = vsub.s32 0, %v126
  %v129 = vsel %vm127, %v128, %v126
  %v130 = vclz %v129
  %v131 = vsub.s32 %v130, 2
  %vm132 = vcmp.gt.s32.totalorder 0, %v131
  %v133 = vsel %vm132, 0, %v131
  %v134 = vsub.s32 32, %v133
  %v135 = vshll.u32 %v126, %v133
  %v136 = vshrl.u32 %v118, %v134
  %v137 = vor.u32 %v135, %v136
  %v138 = vsub.s32 4294967266, %v133
  %v139 = vadd.s32 %v138, 127
  %v140 = vshll.u32 %v139, 23
  %v141 = vor.u32 4788187, %v140
  %v142 = vand.u32 2147483647, %v141
  %v144 = vcvt.s32.f32 %v137
  %v145 = vmul.f32 %v144, %v142
  %v146 = vxor.u32 %v145, 2147483648
  %v147 = vsel %vm64, %v146, %v145
  %v148 = vsub.s32 4, %v124
  %v149 = vsel %vm64, %v148, %v124
  %v150 = vsel %vm63, %v61, %v147
  %v151 = vsel %vm63, 0, %v149
  %v152 = vcosq.f32.pop %v150
  %v153 = vsinq.f32.pop %v150
  %vm154 = vweird.f32 %v61
  %v155 = vadd.s32 %v151, 3
  %v156 = vand.u32 %v155, 3
  %vm157 = vcmp.lt.s32.totalorder %v156, 2
  %vm158 = vcmp.eq.s32.totalorder %v156, 0
  %v159 = vxor.u32 %v153, 2147483648
  %v160 = vsel %vm158, %v152, %v159
  %vm161 = vcmp.eq.s32.totalorder %v156, 2
  %v162 = vxor.u32 %v152, 2147483648
  %v163 = vsel %vm161, %v162, %v153
  %v164 = vsel %vm157, %v160, %v163
  %v165 = vsel %vm154, nan, %v164
  %v166 = vpack.c.bf16 %v165, %v165
  %v167 = vld [vmem:[%s3] sm:$0xf]
  %v168 = vld [vmem:[%s3 + $0x4] sm:$0xf]
  %v169 = vand.u32 2147483647, %v61
  %vm170 = vcmp.le.f32.partialorder %v169, 0.7853982
  %vm171 = vcmp.lt.s32.totalorder %v61, 0
  %v172 = vand.u32 %v61, 2139095040
  %v173 = vshrl.u32 %v172, 23
  %v174 = vsub.s32 %v173, 127
  %v175 = vand.u32 2147483647, %v61
  %v176 = vand.u32 %v175, 8388607
  %v177 = vor.u32 %v176, 8388608
  %v178 = vsub.s32 0, %v177
  %v179 = vadd.s32 %v174, 1
  %vm180 = vcmp.gt.s32.totalorder %v179, 0
  %v181 = vsel %vm180, %v179, 0
  %v182 = vshrl.u32 %v181, 5
  %v183 = vand.u32 %v181, 31
  %v184 = vsub.s32 32, %v183
  %v185 = vshrl.u32 683565275, %v184
  %v186 = vshll.u32 683565275, %v183
  %v187 = vshrl.u32 2475754826, %v184
  %v188 = vor.u32 %v186, %v187
  %v189 = vshll.u32 2475754826, %v183
  %v190 = vshrl.u32 2131351028, %v184
  %v191 = vor.u32 %v189, %v190
  %v192 = vshll.u32 2131351028, %v183
  %v193 = vshrl.u32 2102212464, %v184
  %v194 = vor.u32 %v192, %v193
  %v195 = vshll.u32 2102212464, %v183
  %v196 = vshrl.u32 920167782, %v184
  %v197 = vor.u32 %v195, %v196
  %v198 = vshll.u32 920167782, %v183
  %v199 = vshrl.u32 1326507024, %v184
  %v200 = vor.u32 %v198, %v199
  %vm201 = vcmp.lt.s32.totalorder %v182, 1
  %vm202 = vcmp.lt.s32.totalorder %v182, 2
  %vm203 = vcmp.lt.s32.totalorder %v182, 3
  %vm204 = vcmp.lt.s32.totalorder %v182, 4
  %v205 = vsel %vm201, %v185, %v188
  %v206 = vsel %vm204, %v194, 2102212464
  %v207 = vsel %vm203, %v191, %v206
  %v208 = vsel %vm202, %v205, %v207
  %v209 = vsel %vm201, %v188, %v191
  %v210 = vsel %vm204, %v197, 920167782
  %v211 = vsel %vm203, %v194, %v210
  %v212 = vsel %vm202, %v209, %v211
  %v213 = vsel %vm201, %v191, %v194
  %v214 = vsel %vm204, %v200, 1326507024
  %v215 = vsel %vm203, %v197, %v214
  %v216 = vsel %vm202, %v213, %v215
  %v217 = vshll.u32 %v177, 8
  %v218 = vmul.u32.u64.compose %v217, %v216
  %v219 = vextract.low.u32 %v218
  %v220 = vextract.high.u32 %v218
  %v221 = vmul.u32.u64.compose %v217, %v212
  %v222 = vextract.low.u32 %v221
  %v223 = vextract.high.u32 %v221
  %v224 = vmul.u32 %v217, %v208
  %v225 = vadd.s32 %v220, %v222
  %vm226 = vc.u32 %v220, %v222
  %v227 = vadd.s32 %v223, 1
  %v228 = vsel %vm226, %v227, %v223
  %v229 = vadd.s32 %v224, %v228
  %v230 = vadd.s32 %v229, 536870912
  %v231 = vshrl.u32 %v230, 30
  %v232 = vshll.u32 %v231, 30
  %v233 = vsub.s32 %v229, %v232
  %vm234 = vcmp.lt.s32.totalorder %v233, 0
  %v235 = vsub.s32 0, %v233
  %v236 = vsel %vm234, %v235, %v233
  %v237 = vclz %v236
  %v238 = vsub.s32 %v237, 2
  %vm239 = vcmp.gt.s32.totalorder 0, %v238
  %v240 = vsel %vm239, 0, %v238
  %v241 = vsub.s32 32, %v240
  %v242 = vshll.u32 %v233, %v240
  %v243 = vshrl.u32 %v225, %v241
  %v244 = vor.u32 %v242, %v243
  %v245 = vsub.s32 4294967266, %v240
  %v246 = vadd.s32 %v245, 127
  %v247 = vshll.u32 %v246, 23
  %v248 = vor.u32 4788187, %v247
  %v249 = vand.u32 2147483647, %v248
  %v251 = vcvt.s32.f32 %v244
  %v252 = vmul.f32 %v251, %v249
  %v253 = vxor.u32 %v252, 2147483648
  %v254 = vsel %vm171, %v253, %v252
  %v255 = vsub.s32 4, %v231
  %v256 = vsel %vm171, %v255, %v231
  %v257 = vsel %vm170, %v61, %v254
  %v258 = vsel %vm170, 0, %v256
  %v259 = vcosq.f32.pop %v257
  %v260 = vsinq.f32.pop %v257
  %vm261 = vweird.f32 %v61
  %v262 = vand.u32 %v258, 3
  %vm263 = vcmp.lt.s32.totalorder %v262, 2
  %vm264 = vcmp.eq.s32.totalorder %v262, 0
  %v265 = vxor.u32 %v260, 2147483648
  %v266 = vsel %vm264, %v259, %v265
  %vm267 = vcmp.eq.s32.totalorder %v262, 2
  %v268 = vxor.u32 %v259, 2147483648
  %v269 = vsel %vm267, %v268, %v260
  %v270 = vsel %vm263, %v266, %v269
  %v271 = vsel %vm261, nan, %v270
  %v272 = vpack.c.bf16 %v271, %v271
  %v273 = vld [vmem:[%s4] sm:$0xf]
  %v274 = vld [vmem:[%s4 + $0x4] sm:$0xf]
  %v277 = vunpack.c.l.b16 %v273
  %v278 = vunpack.c.l.b16 %v274
  %v279 = vpack.c.b16 %v278, %v277
  %vm281 = vcmask 130048
  %v283 = vsel %vm281, %v272, 0
  %285 = vmatprep.subr.bf16.mxu0 0
  %286 = vmatpush1.bf16.msra.mxu0 %v279
  %287 = vmatprep.subr.bf16.mxu0 0
  %288 = vmatpush1.bf16.msra.mxu0 0
  %289 = vmatprep.subr.bf16.mxu0 0
  %290 = vmatpush1.bf16.msra.mxu0 0
  %291 = vmatprep.subr.bf16.mxu0 0
  %292 = vmatpush1.bf16.msra.mxu0 0
  %293 = vmatprep.subr.bf16.mxu0 0
  %294 = vmatpush1.bf16.msra.mxu0 0
  %295 = vmatprep.subr.bf16.mxu0 0
  %296 = vmatpush1.bf16.msra.mxu0 0
  %297 = vmatprep.subr.bf16.mxu0 0
  %298 = vmatpush1.bf16.msra.mxu0 0
  %299 = vmatprep.subr.bf16.mxu0 0
  %300 = vmatpush1.bf16.msra.mxu0 0
  %301 = vmatprep.subr.bf16.mxu0 0
  %302 = vmatpush1.bf16.msra.mxu0 0
  %303 = vmatprep.subr.bf16.mxu0 0
  %304 = vmatpush1.bf16.msra.mxu0 0
  %305 = vmatprep.subr.bf16.mxu0 0
  %306 = vmatpush1.bf16.msra.mxu0 0
  %307 = vmatprep.subr.bf16.mxu0 0
  %308 = vmatpush1.bf16.msra.mxu0 0
  %309 = vmatprep.subr.bf16.mxu0 0
  %310 = vmatpush1.bf16.msra.mxu0 0
  %311 = vmatprep.subr.bf16.mxu0 0
  %312 = vmatpush1.bf16.msra.mxu0 0
  %313 = vmatprep.subr.bf16.mxu0 0
  %314 = vmatpush1.bf16.msra.mxu0 0
  %315 = vmatprep.subr.bf16.mxu0 0
  %316 = vmatpush1.bf16.msra.mxu0 0
  %317 = vmatprep.mubr.bf16.mxu0 0
  %318 = vmatmul.mubr.bf16.gmra.mrb[0].mxu0 %v283
  %v319 = vpop.f32.mrb[0].mxu0
  %v320 = vadd.f32 0.0, %v319
  %v321 = vpop.f32.mrb[0].mxu0
  %v322 = vpop.f32.mrb[0].mxu0
  %v323 = vpop.f32.mrb[0].mxu0
  %324 = vdwg.mxu0
  %v327 = vunpack.c.l.b16 %v167
  %v328 = vunpack.c.l.b16 %v168
  %v329 = vpack.c.b16 %v328, %v327
  %v332 = vsel %vm281, %v166, 0
  %334 = vmatprep.subr.bf16.mxu0 0
  %335 = vmatpush1.bf16.msra.mxu0 %v329
  %336 = vmatprep.subr.bf16.mxu0 0
  %337 = vmatpush1.bf16.msra.mxu0 0
  %338 = vmatprep.subr.bf16.mxu0 0
  %339 = vmatpush1.bf16.msra.mxu0 0
  %340 = vmatprep.subr.bf16.mxu0 0
  %341 = vmatpush1.bf16.msra.mxu0 0
  %342 = vmatprep.subr.bf16.mxu0 0
  %343 = vmatpush1.bf16.msra.mxu0 0
  %344 = vmatprep.subr.bf16.mxu0 0
  %345 = vmatpush1.bf16.msra.mxu0 0
  %346 = vmatprep.subr.bf16.mxu0 0
  %347 = vmatpush1.bf16.msra.mxu0 0
  %348 = vmatprep.subr.bf16.mxu0 0
  %349 = vmatpush1.bf16.msra.mxu0 0
  %350 = vmatprep.subr.bf16.mxu0 0
  %351 = vmatpush1.bf16.msra.mxu0 0
  %352 = vmatprep.subr.bf16.mxu0 0
  %353 = vmatpush1.bf16.msra.mxu0 0
  %354 = vmatprep.subr.bf16.mxu0 0
  %355 = vmatpush1.bf16.msra.mxu0 0
  %356 = vmatprep.subr.bf16.mxu0 0
  %357 = vmatpush1.bf16.msra.mxu0 0
  %358 = vmatprep.subr.bf16.mxu0 0
  %359 = vmatpush1.bf16.msra.mxu0 0
  %360 = vmatprep.subr.bf16.mxu0 0
  %361 = vmatpush1.bf16.msra.mxu0 0
  %362 = vmatprep.subr.bf16.mxu0 0
  %363 = vmatpush1.bf16.msra.mxu0 0
  %364 = vmatprep.subr.bf16.mxu0 0
  %365 = vmatpush1.bf16.msra.mxu0 0
  %366 = vmatprep.mubr.bf16.mxu0 0
  %367 = vmatmul.mubr.bf16.gmra.mrb[0].mxu0 %v332
  %v368 = vpop.f32.mrb[0].mxu0
  %v369 = vadd.f32 %v320, %v368
  %v370 = vpop.f32.mrb[0].mxu0
  %v371 = vpop.f32.mrb[0].mxu0
  %v372 = vpop.f32.mrb[0].mxu0
  %373 = vdwg.mxu0
  %v374 = vld [vmem:[%s5] sm:$0x1]
  %v376 = vlaneseq
  %v377 = vshrl.u32 %v376, 7
  %v378 = vsub.s32 0, %v377
  %v379 = vrot.slane %v374, %v378
  %v381 = vadd.f32 %v369, %v379
  %v382 = vxor.u32 %v381, 2147483648
  %v383 = vmul.f32 %v382, 1.442695
  %v384 = vpow.pop %v383
  %v385 = vadd.f32 %v384, 1.0
  %v386 = vrcp.pop %v385
  %v387 = vmul.f32 1.0, %v386
  %v388 = vmul.f32 %v381, %v387
  %v389 = vpack.c.bf16 %v388, %v388
  %v390 = vld [vmem:[%s6] sm:$0xf]
  %v391 = vld [vmem:[%s6 + $0x4] sm:$0xf]
  %v392 = vld [vmem:[%s6 + $0x8] sm:$0xf]
  %v393 = vld [vmem:[%s6 + $0xc] sm:$0xf]
  %v394 = vld [vmem:[%s6 + $0x10] sm:$0xf]
  %v395 = vld [vmem:[%s6 + $0x14] sm:$0xf]
  %v396 = vld [vmem:[%s6 + $0x18] sm:$0xf]
  %v397 = vld [vmem:[%s6 + $0x1c] sm:$0xf]
  %v398 = vld [vmem:[%s6 + $0x20] sm:$0xf]
  %v399 = vld [vmem:[%s6 + $0x24] sm:$0xf]
  %v400 = vld [vmem:[%s6 + $0x28] sm:$0xf]
  %v401 = vld [vmem:[%s6 + $0x2c] sm:$0xf]
  %v402 = vld [vmem:[%s6 + $0x30] sm:$0xf]
  %v403 = vld [vmem:[%s6 + $0x34] sm:$0xf]
  %v404 = vld [vmem:[%s6 + $0x38] sm:$0xf]
  %v405 = vld [vmem:[%s6 + $0x3c] sm:$0xf]
  %v406 = vld [vmem:[%s7] sm:$0x1]
  %v408 = vlaneseq
  %v409 = vshrl.u32 %v408, 7
  %v410 = vsub.s32 0, %v409
  %v411 = vrot.slane %v406, %v410
  %v429 = vunpack.c.l.b16 %v390
  %v430 = vunpack.c.l.b16 %v391
  %v431 = vunpack.c.l.b16 %v392
  %v432 = vunpack.c.l.b16 %v393
  %v433 = vunpack.c.l.b16 %v394
  %v434 = vunpack.c.l.b16 %v395
  %v435 = vunpack.c.l.b16 %v396
  %v436 = vunpack.c.l.b16 %v397
  %v437 = vunpack.c.l.b16 %v398
  %v438 = vunpack.c.l.b16 %v399
  %v439 = vunpack.c.l.b16 %v400
  %v440 = vunpack.c.l.b16 %v401
  %v441 = vunpack.c.l.b16 %v402
  %v442 = vunpack.c.l.b16 %v403
  %v443 = vunpack.c.l.b16 %v404
  %v444 = vunpack.c.l.b16 %v405
  %v445 = vpack.c.b16 %v430, %v429
  %v446 = vpack.c.b16 %v432, %v431
  %v447 = vpack.c.b16 %v434, %v433
  %v448 = vpack.c.b16 %v436, %v435
  %v449 = vpack.c.b16 %v438, %v437
  %v450 = vpack.c.b16 %v440, %v439
  %v451 = vpack.c.b16 %v442, %v441
  %v452 = vpack.c.b16 %v444, %v443
  %461 = vmatprep.subr.bf16.mxu0 0
  %462 = vmatpush1.bf16.msra.mxu0 %v445
  %463 = vmatprep.subr.bf16.mxu0 0
  %464 = vmatpush1.bf16.msra.mxu0 %v446
  %465 = vmatprep.subr.bf16.mxu0 0
  %466 = vmatpush1.bf16.msra.mxu0 %v447
  %467 = vmatprep.subr.bf16.mxu0 0
  %468 = vmatpush1.bf16.msra.mxu0 %v448
  %469 = vmatprep.subr.bf16.mxu0 0
  %470 = vmatpush1.bf16.msra.mxu0 %v449
  %471 = vmatprep.subr.bf16.mxu0 0
  %472 = vmatpush1.bf16.msra.mxu0 %v450
  %473 = vmatprep.subr.bf16.mxu0 0
  %474 = vmatpush1.bf16.msra.mxu0 %v451
  %475 = vmatprep.subr.bf16.mxu0 0
  %476 = vmatpush1.bf16.msra.mxu0 %v452
  %477 = vmatprep.subr.bf16.mxu0 0
  %478 = vmatpush1.bf16.msra.mxu0 0
  %479 = vmatprep.subr.bf16.mxu0 0
  %480 = vmatpush1.bf16.msra.mxu0 0
  %481 = vmatprep.subr.bf16.mxu0 0
  %482 = vmatpush1.bf16.msra.mxu0 0
  %483 = vmatprep.subr.bf16.mxu0 0
  %484 = vmatpush1.bf16.msra.mxu0 0
  %485 = vmatprep.subr.bf16.mxu0 0
  %486 = vmatpush1.bf16.msra.mxu0 0
  %487 = vmatprep.subr.bf16.mxu0 0
  %488 = vmatpush1.bf16.msra.mxu0 0
  %489 = vmatprep.subr.bf16.mxu0 0
  %490 = vmatpush1.bf16.msra.mxu0 0
  %491 = vmatprep.subr.bf16.mxu0 0
  %492 = vmatpush1.bf16.msra.mxu0 0
  %493 = vmatprep.mubr.bf16.mxu0 0
  %494 = vmatmul.mubr.bf16.gmra.mrb[0].mxu0 %v389
  %v495 = vpop.f32.mrb[0].mxu0
  %v496 = vadd.f32 %v411, %v495
  %v497 = vpop.f32.mrb[0].mxu0
  %v498 = vpop.f32.mrb[0].mxu0
  %v499 = vpop.f32.mrb[0].mxu0
  %500 = vdwg.mxu0
  %v501 = vpack.c.bf16 %v496, %v496
  %v502 = vld [vmem:[%s0] sm:$0xff]
  %v503 = vpack.c.bf16 %v502, %v502
  %v504 = vld [vmem:[%s8] sm:$0xf]
  %v505 = vld [vmem:[%s8 + $0x4] sm:$0xf]
  %v506 = vld [vmem:[%s8 + $0x8] sm:$0xf]
  %v507 = vld [vmem:[%s8 + $0xc] sm:$0xf]
  %v508 = vld [vmem:[%s8 + $0x10] sm:$0xf]
  %v509 = vld [vmem:[%s8 + $0x14] sm:$0xf]
  %v510 = vld [vmem:[%s8 + $0x18] sm:$0xf]
  %v511 = vld [vmem:[%s8 + $0x1c] sm:$0xf]
  %v512 = vld [vmem:[%s8 + $0x20] sm:$0xf]
  %v513 = vld [vmem:[%s8 + $0x24] sm:$0xf]
  %v514 = vld [vmem:[%s8 + $0x28] sm:$0xf]
  %v515 = vld [vmem:[%s8 + $0x2c] sm:$0xf]
  %v516 = vld [vmem:[%s8 + $0x30] sm:$0xf]
  %v517 = vld [vmem:[%s8 + $0x34] sm:$0xf]
  %v518 = vld [vmem:[%s8 + $0x38] sm:$0xf]
  %v519 = vld [vmem:[%s8 + $0x3c] sm:$0xf]
  %v520 = vld [vmem:[%s8 + $0x40] sm:$0x3]
  %v521 = vld [vmem:[%s9] sm:$0x1]
  %v523 = vlaneseq
  %v524 = vshrl.u32 %v523, 7
  %v525 = vsub.s32 0, %v524
  %v526 = vrot.slane %v521, %v525
  %v545 = vunpack.c.l.b16 %v504
  %v546 = vunpack.c.l.b16 %v505
  %v547 = vunpack.c.l.b16 %v506
  %v548 = vunpack.c.l.b16 %v507
  %v549 = vunpack.c.l.b16 %v508
  %v550 = vunpack.c.l.b16 %v509
  %v551 = vunpack.c.l.b16 %v510
  %v552 = vunpack.c.l.b16 %v511
  %v553 = vunpack.c.l.b16 %v512
  %v554 = vunpack.c.l.b16 %v513
  %v555 = vunpack.c.l.b16 %v514
  %v556 = vunpack.c.l.b16 %v515
  %v557 = vunpack.c.l.b16 %v516
  %v558 = vunpack.c.l.b16 %v517
  %v559 = vunpack.c.l.b16 %v518
  %v560 = vunpack.c.l.b16 %v519
  %v561 = vunpack.c.l.b16 %v520
  %v562 = vpack.c.b16 %v546, %v545
  %v563 = vpack.c.b16 %v548, %v547
  %v564 = vpack.c.b16 %v550, %v549
  %v565 = vpack.c.b16 %v552, %v551
  %v566 = vpack.c.b16 %v554, %v553
  %v567 = vpack.c.b16 %v556, %v555
  %v568 = vpack.c.b16 %v558, %v557
  %v569 = vpack.c.b16 %v560, %v559
  %v570 = vpack.c.b16 %v561, %v561
  %vm579 = vcmask 31744
  %v581 = vsel %vm579, %v503, 0
  %vm583 = vcmask 1041408
  %v585 = vsel %vm583, %v570, 0
  %587 = vmatprep.subr.bf16.mxu0 0
  %588 = vmatpush1.bf16.msra.mxu0 %v562
  %589 = vmatprep.subr.bf16.mxu0 0
  %590 = vmatpush1.bf16.msra.mxu0 %v563
  %591 = vmatprep.subr.bf16.mxu0 0
  %592 = vmatpush1.bf16.msra.mxu0 %v564
  %593 = vmatprep.subr.bf16.mxu0 0
  %594 = vmatpush1.bf16.msra.mxu0 %v565
  %595 = vmatprep.subr.bf16.mxu0 0
  %596 = vmatpush1.bf16.msra.mxu0 %v566
  %597 = vmatprep.subr.bf16.mxu0 0
  %598 = vmatpush1.bf16.msra.mxu0 %v567
  %599 = vmatprep.subr.bf16.mxu0 0
  %600 = vmatpush1.bf16.msra.mxu0 %v568
  %601 = vmatprep.subr.bf16.mxu0 0
  %602 = vmatpush1.bf16.msra.mxu0 %v569
  %603 = vmatprep.subr.bf16.mxu0 0
  %604 = vmatpush1.bf16.msra.mxu0 %v585
  %605 = vmatprep.subr.bf16.mxu0 0
  %606 = vmatpush1.bf16.msra.mxu0 0
  %607 = vmatprep.subr.bf16.mxu0 0
  %608 = vmatpush1.bf16.msra.mxu0 0
  %609 = vmatprep.subr.bf16.mxu0 0
  %610 = vmatpush1.bf16.msra.mxu0 0
  %611 = vmatprep.subr.bf16.mxu0 0
  %612 = vmatpush1.bf16.msra.mxu0 0
  %613 = vmatprep.subr.bf16.mxu0 0
  %614 = vmatpush1.bf16.msra.mxu0 0
  %615 = vmatprep.subr.bf16.mxu0 0
  %616 = vmatpush1.bf16.msra.mxu0 0
  %617 = vmatprep.subr.bf16.mxu0 0
  %618 = vmatpush1.bf16.msra.mxu0 0
  %619 = vmatprep.mubr.bf16.mxu0 %v581
  %620 = vmatmul.mubr.bf16.gmra.mrb[0].mxu0 %v501
  %v621 = vpop.f32.mrb[0].mxu0
  %v622 = vadd.f32 %v526, %v621
  %v623 = vpop.f32.mrb[0].mxu0
  %v624 = vpop.f32.mrb[0].mxu0
  %v625 = vpop.f32.mrb[0].mxu0
  %626 = vdwg.mxu0
  %v627 = vmax.f32 %v622, 0.0
  %v628 = vpack.c.bf16 %v627, %v627
  %v629 = vld [vmem:[%s10] sm:$0xf]
  %v630 = vld [vmem:[%s10 + $0x4] sm:$0xf]
  %v631 = vld [vmem:[%s10 + $0x8] sm:$0xf]
  %v632 = vld [vmem:[%s10 + $0xc] sm:$0xf]
  %v633 = vld [vmem:[%s10 + $0x10] sm:$0xf]
  %v634 = vld [vmem:[%s10 + $0x14] sm:$0xf]
  %v635 = vld [vmem:[%s10 + $0x18] sm:$0xf]
  %v636 = vld [vmem:[%s10 + $0x1c] sm:$0xf]
  %v637 = vld [vmem:[%s10 + $0x20] sm:$0xf]
  %v638 = vld [vmem:[%s10 + $0x24] sm:$0xf]
  %v639 = vld [vmem:[%s10 + $0x28] sm:$0xf]
  %v640 = vld [vmem:[%s10 + $0x2c] sm:$0xf]
  %v641 = vld [vmem:[%s10 + $0x30] sm:$0xf]
  %v642 = vld [vmem:[%s10 + $0x34] sm:$0xf]
  %v643 = vld [vmem:[%s10 + $0x38] sm:$0xf]
  %v644 = vld [vmem:[%s10 + $0x3c] sm:$0xf]
  %v645 = vld [vmem:[%s10 + $0x40] sm:$0xf]
  %v646 = vld [vmem:[%s10 + $0x44] sm:$0xf]
  %v647 = vld [vmem:[%s10 + $0x48] sm:$0xf]
  %v648 = vld [vmem:[%s10 + $0x4c] sm:$0xf]
  %v649 = vld [vmem:[%s11] sm:$0x1]
  %v651 = vlaneseq
  %v652 = vshrl.u32 %v651, 7
  %v653 = vsub.s32 0, %v652
  %v654 = vrot.slane %v649, %v653
  %v676 = vunpack.c.l.b16 %v629
  %v677 = vunpack.c.l.b16 %v630
  %v678 = vunpack.c.l.b16 %v631
  %v679 = vunpack.c.l.b16 %v632
  %v680 = vunpack.c.l.b16 %v633
  %v681 = vunpack.c.l.b16 %v634
  %v682 = vunpack.c.l.b16 %v635
  %v683 = vunpack.c.l.b16 %v636
  %v684 = vunpack.c.l.b16 %v637
  %v685 = vunpack.c.l.b16 %v638
  %v686 = vunpack.c.l.b16 %v639
  %v687 = vunpack.c.l.b16 %v640
  %v688 = vunpack.c.l.b16 %v641
  %v689 = vunpack.c.l.b16 %v642
  %v690 = vunpack.c.l.b16 %v643
  %v691 = vunpack.c.l.b16 %v644
  %v692 = vunpack.c.l.b16 %v645
  %v693 = vunpack.c.l.b16 %v646
  %v694 = vunpack.c.l.b16 %v647
  %v695 = vunpack.c.l.b16 %v648
  %v696 = vpack.c.b16 %v677, %v676
  %v697 = vpack.c.b16 %v679, %v678
  %v698 = vpack.c.b16 %v681, %v680
  %v699 = vpack.c.b16 %v683, %v682
  %v700 = vpack.c.b16 %v685, %v684
  %v701 = vpack.c.b16 %v687, %v686
  %v702 = vpack.c.b16 %v689, %v688
  %v703 = vpack.c.b16 %v691, %v690
  %v704 = vpack.c.b16 %v693, %v692
  %v705 = vpack.c.b16 %v695, %v694
  %vm716 = vcmask 261120
  %v718 = vsel %vm716, %v628, 0
  %720 = vmatprep.subr.bf16.mxu0 0
  %721 = vmatpush1.bf16.msra.mxu0 %v696
  %722 = vmatprep.subr.bf16.mxu0 0
  %723 = vmatpush1.bf16.msra.mxu0 %v697
  %724 = vmatprep.subr.bf16.mxu0 0
  %725 = vmatpush1.bf16.msra.mxu0 %v698
  %726 = vmatprep.subr.bf16.mxu0 0
  %727 = vmatpush1.bf16.msra.mxu0 %v699
  %728 = vmatprep.subr.bf16.mxu0 0
  %729 = vmatpush1.bf16.msra.mxu0 %v700
  %730 = vmatprep.subr.bf16.mxu0 0
  %731 = vmatpush1.bf16.msra.mxu0 %v701
  %732 = vmatprep.subr.bf16.mxu0 0
  %733 = vmatpush1.bf16.msra.mxu0 %v702
  %734 = vmatprep.subr.bf16.mxu0 0
  %735 = vmatpush1.bf16.msra.mxu0 %v703
  %736 = vmatprep.subr.bf16.mxu0 0
  %737 = vmatpush1.bf16.msra.mxu0 %v704
  %738 = vmatprep.subr.bf16.mxu0 0
  %739 = vmatpush1.bf16.msra.mxu0 %v705
  %740 = vmatprep.subr.bf16.mxu0 0
  %741 = vmatpush1.bf16.msra.mxu0 0
  %742 = vmatprep.subr.bf16.mxu0 0
  %743 = vmatpush1.bf16.msra.mxu0 0
  %744 = vmatprep.subr.bf16.mxu0 0
  %745 = vmatpush1.bf16.msra.mxu0 0
  %746 = vmatprep.subr.bf16.mxu0 0
  %747 = vmatpush1.bf16.msra.mxu0 0
  %748 = vmatprep.subr.bf16.mxu0 0
  %749 = vmatpush1.bf16.msra.mxu0 0
  %750 = vmatprep.subr.bf16.mxu0 0
  %751 = vmatpush1.bf16.msra.mxu0 0
  %752 = vmatprep.mubr.bf16.mxu0 %v718
  %753 = vmatmul.mubr.bf16.gmra.mrb[0].mxu0 %v501
  %v754 = vpop.f32.mrb[0].mxu0
  %v755 = vadd.f32 %v654, %v754
  %v756 = vpop.f32.mrb[0].mxu0
  %v757 = vpop.f32.mrb[0].mxu0
  %v758 = vpop.f32.mrb[0].mxu0
  %759 = vdwg.mxu0
  %v760 = vmax.f32 %v755, 0.0
  %v761 = vpack.c.bf16 %v760, %v760
  %v762 = vld [vmem:[%s12] sm:$0xf]
  %v763 = vld [vmem:[%s12 + $0x4] sm:$0xf]
  %v764 = vld [vmem:[%s12 + $0x8] sm:$0xf]
  %v765 = vld [vmem:[%s12 + $0xc] sm:$0xf]
  %v766 = vld [vmem:[%s13] sm:$0x1]
  %v768 = vlaneseq
  %v769 = vshrl.u32 %v768, 7
  %v770 = vsub.s32 0, %v769
  %v771 = vrot.slane %v766, %v770
  %v777 = vunpack.c.l.b16 %v762
  %v778 = vunpack.c.l.b16 %v763
  %v779 = vunpack.c.l.b16 %v764
  %v780 = vunpack.c.l.b16 %v765
  %v781 = vpack.c.b16 %v778, %v777
  %v782 = vpack.c.b16 %v780, %v779
  %v786 = vsel %vm716, %v761, 0
  %788 = vmatprep.subr.bf16.mxu0 0
  %789 = vmatpush1.bf16.msra.mxu0 %v781
  %790 = vmatprep.subr.bf16.mxu0 0
  %791 = vmatpush1.bf16.msra.mxu0 %v782
  %792 = vmatprep.subr.bf16.mxu0 0
  %793 = vmatpush1.bf16.msra.mxu0 0
  %794 = vmatprep.subr.bf16.mxu0 0
  %795 = vmatpush1.bf16.msra.mxu0 0
  %796 = vmatprep.subr.bf16.mxu0 0
  %797 = vmatpush1.bf16.msra.mxu0 0
  %798 = vmatprep.subr.bf16.mxu0 0
  %799 = vmatpush1.bf16.msra.mxu0 0
  %800 = vmatprep.subr.bf16.mxu0 0
  %801 = vmatpush1.bf16.msra.mxu0 0
  %802 = vmatprep.subr.bf16.mxu0 0
  %803 = vmatpush1.bf16.msra.mxu0 0
  %804 = vmatprep.subr.bf16.mxu0 0
  %805 = vmatpush1.bf16.msra.mxu0 0
  %806 = vmatprep.subr.bf16.mxu0 0
  %807 = vmatpush1.bf16.msra.mxu0 0
  %808 = vmatprep.subr.bf16.mxu0 0
  %809 = vmatpush1.bf16.msra.mxu0 0
  %810 = vmatprep.subr.bf16.mxu0 0
  %811 = vmatpush1.bf16.msra.mxu0 0
  %812 = vmatprep.subr.bf16.mxu0 0
  %813 = vmatpush1.bf16.msra.mxu0 0
  %814 = vmatprep.subr.bf16.mxu0 0
  %815 = vmatpush1.bf16.msra.mxu0 0
  %816 = vmatprep.subr.bf16.mxu0 0
  %817 = vmatpush1.bf16.msra.mxu0 0
  %818 = vmatprep.subr.bf16.mxu0 0
  %819 = vmatpush1.bf16.msra.mxu0 0
  %820 = vmatprep.mubr.bf16.mxu0 0
  %821 = vmatmul.mubr.bf16.gmra.mrb[0].mxu0 %v786
  %v822 = vpop.f32.mrb[0].mxu0
  %v823 = vadd.f32 %v771, %v822
  %v824 = vpop.f32.mrb[0].mxu0
  %v825 = vpop.f32.mrb[0].mxu0
  %v826 = vpop.f32.mrb[0].mxu0
  %827 = vdwg.mxu0
  %828 = vst.msk [vmem:[%s14] sm:$0xff] %vm579, %v823
  // Predicated region
  $region58: #{tpu_custom_call.1} parent=0 // pred_check
    _
  $region59: #{tpu_custom_call.1} parent=0 // pred_check_branch
    %830 = sbr.rel (0) target = $region61
  $region60: #{tpu_custom_call.1} parent=0 // pred_region
    _
  $region61: #{tpu_custom_call.1} parent=0 // pred_fallthru
    _
  // Predicated region
  $region62: #{tpu_custom_call.1} parent=0 // pred_check
    _
  $region63: #{tpu_custom_call.1} parent=0 // pred_check_branch
    %832 = sbr.rel (0) target = $region65
  $region64: #{tpu_custom_call.1} parent=0 // pred_region
    _
  $region65: #{tpu_custom_call.1} parent=0 // pred_fallthru
    _

</llo_original>
